<compile_context>
chip_gen: v7x
topology: tpu7x:2x2x1
jax: 0.10.0
libtpu: 0.0.40
codegen_flags: <defaults>
</compile_context>

<pallas_src>
import jax
import jax.numpy as jnp
from jax import lax
from jax.experimental import pallas as pl
from jax.experimental.pallas import tpu as pltpu

LANES = 128
TILE_ROWS = 8192                 # 8192 * 128 * 4 B = 4 MiB per f32 input tile
ACC_ROWS = 64                    # (64, 128) f32 accumulator = 8 vregs
VMEM_LIMIT_BYTES = 32 * 1024 * 1024


def _cdiv(a, b):
    return -(-a // b)


def _is_two_core_chip():
    # v7x exposes 2 TensorCores per device; v5e / v6e have 1.
    try:
        kind = (jax.devices()[0].device_kind or "").lower()
    except Exception:
        return False
    return "7" in kind


def _make_mse_kernel(tile_rows, rows, tiles_per_split, num_tiles, has_phantom):
    """Builds the kernel with all geometry baked in as Python statics."""
    acc_rows = ACC_ROWS
    rows_in_last = rows - (num_tiles - 1) * tile_rows       # 1 .. tile_rows (static)
    n_full_last = rows_in_last // acc_rows
    rem_last = rows_in_last % acc_rows
    n_full = tile_rows // acc_rows                           # used only on non-last tiles
    last_is_full = (rows_in_last == tile_rows) and (tile_rows % acc_rows == 0)

    def _chunk_sq(p_ref, t_ref, start, nrows):
        p = p_ref[pl.ds(start, nrows), :].astype(jnp.float32)
        t = t_ref[pl.ds(start, nrows), :].astype(jnp.float32)
        d = p - t
        return d * d

    def _accum_chunks(p_ref, t_ref, o_ref, n_chunks):
        # Chunked accumulation: never materializes the full tile as a value
        # (a 8192x128 f32 value would be 1024 vregs and spill); carries an
        # 8-vreg accumulator through a partially unrolled fori_loop instead.
        if n_chunks == 0:
            return

        def body(k, acc):
            start = pl.multiple_of(k * acc_rows, acc_rows)
            return acc + _chunk_sq(p_ref, t_ref, start, acc_rows)

        unroll = True if n_chunks <= 8 else 8
        acc = lax.fori_loop(0, n_chunks, body,
                            jnp.zeros((acc_rows, LANES), jnp.float32),
                            unroll=unroll)
        o_ref[...] += acc

    def accumulate_full(p_ref, t_ref, o_ref):
        _accum_chunks(p_ref, t_ref, o_ref, n_full)

    def accumulate_last(p_ref, t_ref, o_ref):
        # Full chunks of the last (possibly ragged) tile, then one statically
        # sized remainder chunk; rows past `rows` are never even loaded.
        _accum_chunks(p_ref, t_ref, o_ref, n_full_last)
        if rem_last:
            sq = _chunk_sq(p_ref, t_ref, n_full_last * acc_rows, rem_last)
            o_ref[pl.ds(0, rem_last), :] += sq

    def kernel(p_ref, t_ref, o_ref):
        c = pl.program_id(0)   # core-split axis (size 1 on single-TC chips)
        i = pl.program_id(1)   # tile axis within the split

        # Zero this split's resident partial-sum block at the start of its loop.
        @pl.when(i == 0)
        def _():
            o_ref[...] = jnp.zeros_like(o_ref)

        if num_tiles == 1:
            accumulate_last(p_ref, t_ref, o_ref)
        elif last_is_full and not has_phantom:
            # Fully aligned case: every tile is identical, no branching at all.
            accumulate_full(p_ref, t_ref, o_ref)
        else:
            logical = c * tiles_per_split + i

            @pl.when(logical < num_tiles - 1)
            def _():
                accumulate_full(p_ref, t_ref, o_ref)

            @pl.when(logical == num_tiles - 1)
            def _():
                accumulate_last(p_ref, t_ref, o_ref)
            # logical >= num_tiles (phantom block on the 2-way split): skip.

    return kernel


def pixel_loss(pred, target):
    """mean((pred - target)**2) over all elements (nn.MSELoss default)."""
    assert pred.shape == target.shape, "pred/target must have the same shape"
    n_elems = pred.size
    if n_elems == 0:
        # Matches PyTorch: mean over zero elements is NaN.
        return jnp.array(float("nan"), dtype=pred.dtype)

    p_flat = pred.reshape(-1)
    t_flat = target.reshape(-1)
    # TODO(synk): numel % 128 != 0 still needs a (cheap, one-partial-row) pad
    # because the lane-dense (rows, 128) reshape requires lane alignment;
    # image-shaped inputs essentially never hit this.
    if n_elems % LANES != 0:
        pad_amt = LANES - (n_elems % LANES)
        p_flat = jnp.pad(p_flat, (0, pad_amt))
        t_flat = jnp.pad(t_flat, (0, pad_amt))
    rows = p_flat.size // LANES
    p2 = p_flat.reshape(rows, LANES)
    t2 = t_flat.reshape(rows, LANES)

    # Tiling / grid geometry (all Python statics).
    # If the whole slab fits in one tile, use the exact row count (valid because
    # the block then equals the full array dims, for any dtype's packing).
    tile_rows = rows if rows <= TILE_ROWS else TILE_ROWS
    num_tiles = _cdiv(rows, tile_rows)

    two_core = _is_two_core_chip()
    nsplit = 2 if (two_core and num_tiles >= 2) else 1
    tiles_per_split = _cdiv(num_tiles, nsplit)
    has_phantom = nsplit * tiles_per_split > num_tiles   # odd tile count, 2-way split

    kernel = _make_mse_kernel(tile_rows, rows, tiles_per_split, num_tiles,
                              has_phantom)

    if has_phantom:
        # Clamp phantom blocks onto the last real block; the kernel skips their
        # compute entirely.
        def in_map(c, i):
            return (jnp.minimum(c * tiles_per_split + i, num_tiles - 1), 0)
    else:
        def in_map(c, i):
            return (c * tiles_per_split + i, 0)

    item = jnp.dtype(pred.dtype).itemsize
    cost = pl.CostEstimate(
        flops=3 * n_elems,
        transcendentals=0,
        bytes_accessed=2 * n_elems * item + nsplit * ACC_ROWS * LANES * 4,
    )

    def build(dim_sems):
        return pl.pallas_call(
            kernel,
            out_shape=jax.ShapeDtypeStruct((nsplit * ACC_ROWS, LANES), jnp.float32),
            grid_spec=pltpu.PrefetchScalarGridSpec(
                num_scalar_prefetch=0,
                grid=(nsplit, tiles_per_split),
                in_specs=[
                    pl.BlockSpec((tile_rows, LANES), in_map),
                    pl.BlockSpec((tile_rows, LANES), in_map),
                ],
                # Each core-split owns its own resident partial-sum block.
                out_specs=pl.BlockSpec((ACC_ROWS, LANES), lambda c, i: (c, 0)),
            ),
            compiler_params=pltpu.CompilerParams(
                dimension_semantics=dim_sems,
                vmem_limit_bytes=VMEM_LIMIT_BYTES,
            ),
            cost_estimate=cost,
        )

    if nsplit == 2:
        # v7x: explicitly shard the leading grid axis across the 2 TensorCores.
        try:
            partials = build((pltpu.CORE_PARALLEL, pltpu.ARBITRARY))(p2, t2)
        except Exception:
            partials = build(("parallel", "arbitrary"))(p2, t2)
    else:
        partials = build(("arbitrary", "arbitrary"))(p2, t2)

    # Tiny final reduction + mean over the ORIGINAL element count.
    mean = jnp.sum(partials) / jnp.float32(n_elems)
    return mean.astype(pred.dtype)


if __name__ == "__main__":
    key = jax.random.PRNGKey(0)
    k1, k2, k3, k4, k5, k6, k7, k8 = jax.random.split(key, 8)

    # Small NCHW image pair (PixelLoss forward: MSELoss(pred, target)).
    pred = jax.random.normal(k1, (2, 4, 16, 16), dtype=jnp.float32)
    target = jax.random.normal(k2, (2, 4, 16, 16), dtype=jnp.float32)
    loss = pixel_loss(pred, target)
    jax.block_until_ready(loss)
    ref = jnp.mean((pred - target) ** 2)
    assert jnp.allclose(loss, ref, rtol=1e-5, atol=1e-6), (loss, ref)

    # Single-tile, many-chunk path (rows not a multiple of the chunk size).
    p1 = jax.random.normal(k3, (2, 4, 300, 256), dtype=jnp.float32)
    t1 = jax.random.normal(k4, (2, 4, 300, 256), dtype=jnp.float32)
    l1 = pixel_loss(p1, t1)
    jax.block_until_ready(l1)
    assert jnp.allclose(l1, jnp.mean((p1 - t1) ** 2), rtol=1e-5, atol=1e-6)

    # Multi-tile path with a ragged last tile (10240 rows -> 8192 + 2048).
    p2_ = jax.random.normal(k5, (1, 4, 512, 640), dtype=jnp.float32)
    t2_ = jax.random.normal(k6, (1, 4, 512, 640), dtype=jnp.float32)
    l2 = pixel_loss(p2_, t2_)
    jax.block_until_ready(l2)
    assert jnp.allclose(l2, jnp.mean((p2_ - t2_) ** 2), rtol=1e-5, atol=1e-6)

    # Rare fallback: numel not a multiple of 128 (pads one partial row).
    p3 = jax.random.normal(k7, (2, 3, 5, 7), dtype=jnp.float32)
    t3 = jax.random.normal(k8, (2, 3, 5, 7), dtype=jnp.float32)
    l3 = pixel_loss(p3, t3)
    jax.block_until_ready(l3)
    assert jnp.allclose(l3, jnp.mean((p3 - t3) ** 2), rtol=1e-5, atol=1e-6)

    print("KERNEL_OK")
</pallas_src>

<mosaic_0001>
module attributes {stable_mosaic.version = 11 : i64} {
  func.func @kernel(%arg0: i32, %arg1: i32, %arg2: memref<16x128xf32, #tpu.memory_space<vmem>>, %arg3: memref<16x128xf32, #tpu.memory_space<vmem>>, %arg4: memref<64x128xf32, #tpu.memory_space<vmem>>) attributes {dimension_semantics = [#tpu.dimension_semantics<arbitrary>, #tpu.dimension_semantics<arbitrary>], iteration_bounds = array<i64: 1, 1>, scalar_prefetch = 0 : i64, scratch_operands = 0 : i64, tpu.core_type = #tpu.core_type<tc>, window_params = [{transform_indices = @transform_0, window_bounds = array<i64: 16, 128>}, {transform_indices = @transform_1, window_bounds = array<i64: 16, 128>}, {transform_indices = @transform_2, window_bounds = array<i64: 64, 128>}]} {
    %c0_i32 = arith.constant 0 : i32
    %0 = arith.cmpi eq, %arg1, %c0_i32 : i32
    %1 = arith.extui %0 : i1 to i32
    %c0_i32_0 = arith.constant 0 : i32
    %2 = arith.cmpi ne, %1, %c0_i32_0 : i32
    scf.if %2 {
      %cst = arith.constant 0.000000e+00 : f32
      %10 = vector.broadcast %cst : f32 to vector<64x128xf32>
      %c0_8 = arith.constant 0 : index
      %c0_9 = arith.constant 0 : index
      %11 = vector.load %arg4[%c0_8, %c0_9] : memref<64x128xf32, #tpu.memory_space<vmem>>, vector<64x128xf32>
      tpu.vector_store %arg4[%c0_8, %c0_9], %10 {strides = array<i32>} : memref<64x128xf32, #tpu.memory_space<vmem>>, vector<64x128xf32>,
    } else {
    }
    %c0 = arith.constant 0 : index
    %c0_1 = arith.constant 0 : index
    %3 = vector.load %arg2[%c0, %c0_1] : memref<16x128xf32, #tpu.memory_space<vmem>>, vector<16x128xf32>
    %c0_2 = arith.constant 0 : index
    %c0_3 = arith.constant 0 : index
    %4 = vector.load %arg3[%c0_2, %c0_3] : memref<16x128xf32, #tpu.memory_space<vmem>>, vector<16x128xf32>
    %5 = arith.subf %3, %4 : vector<16x128xf32>
    %6 = arith.mulf %5, %5 : vector<16x128xf32>
    %c0_4 = arith.constant 0 : index
    %c0_5 = arith.constant 0 : index
    %7 = vector.load %arg4[%c0_4, %c0_5] : memref<64x128xf32, #tpu.memory_space<vmem>>, vector<16x128xf32>
    %8 = arith.addf %7, %6 : vector<16x128xf32>
    %c0_6 = arith.constant 0 : index
    %c0_7 = arith.constant 0 : index
    %9 = vector.load %arg4[%c0_6, %c0_7] : memref<64x128xf32, #tpu.memory_space<vmem>>, vector<16x128xf32>
    tpu.vector_store %arg4[%c0_6, %c0_7], %8 {strides = array<i32>} : memref<64x128xf32, #tpu.memory_space<vmem>>, vector<16x128xf32>,
    return
  }
  func.func @transform_0(%arg0: i32, %arg1: i32) -> (i32, i32) {
    %c1_i32 = arith.constant 1 : i32
    %0 = arith.muli %arg0, %c1_i32 : i32
    %1 = arith.addi %0, %arg1 : i32
    %c0_i32 = arith.constant 0 : i32
    %c0_i32_0 = arith.constant 0 : i32
    return %1, %c0_i32 : i32, i32
  }
  func.func @transform_1(%arg0: i32, %arg1: i32) -> (i32, i32) {
    %c1_i32 = arith.constant 1 : i32
    %0 = arith.muli %arg0, %c1_i32 : i32
    %1 = arith.addi %0, %arg1 : i32
    %c0_i32 = arith.constant 0 : i32
    %c0_i32_0 = arith.constant 0 : i32
    return %1, %c0_i32 : i32, i32
  }
  func.func @transform_2(%arg0: i32, %arg1: i32) -> (i32, i32) {
    %c0_i32 = arith.constant 0 : i32
    %c0_i32_0 = arith.constant 0 : i32
    return %arg0, %c0_i32 : i32, i32
  }
}

</mosaic_0001>

<llo_original>
// kernel: tpu_custom_call.1
$region0: #{tpu_custom_call.1}
  #allocation0 [shape = 'u32[]', space=smem, size = 0x4, offset = 0x4, fixed_abs, tag = 'smem constant byte address 0x4 - core index']
  #allocation1 [shape = 'u32[144,128]{1,0:T(1,128)}', space=vmem, size = 0x12000, scoped, tag = 'internal scratch']
  %s0 = inlined_call_operand.hbm [shape: f32[16,128], index: 0, kind: input, shape index: {}]
  %s1 = inlined_call_operand.hbm [shape: f32[16,128], index: 1, kind: input, shape index: {}]
  %s2 = inlined_call_operand.hbm [shape: f32[64,128], index: 2, kind: output, shape index: {}]
  %s3 = sld [smem:[#allocation0]]
  $region30: #{tpu_custom_call.1} parent=0
    _
  %s5 = ssub.s32 1, %s3
  %s6 = scalar_select 0, %s5, %s3
  $region1: #{tpu_custom_call.1} parent=0
    #allocation2 [shape = 'u8[8192]{0}', space=vmem, size = 0x2000, scoped, tag = 'input window, operand 0, single buffered']
    #allocation3 [shape = 's32[1]{0}', space=sflag, size = 0x4, scoped, tag = 'scoped memory for tpu_custom_call.1']
    #allocation4 [shape = 's32[1]{0}', space=sflag, size = 0x4, scoped, tag = 'scoped memory for tpu_custom_call.1']
    #allocation5 [shape = 'u8[8192]{0}', space=vmem, size = 0x2000, scoped, tag = 'input window, operand 1, single buffered']
    #allocation6 [shape = 's32[1]{0}', space=sflag, size = 0x4, scoped, tag = 'scoped memory for tpu_custom_call.1']
    #allocation7 [shape = 'u8[32768]{0}', space=vmem, size = 0x8000, scoped, tag = 'output window, operand 0, single buffered']
    %7 = vsyncpa [#allocation3], 0
    %8 = vsyncpa [#allocation6], 0
    %9 = vsyncpa [#allocation4], 0
    // Predicated region
    $region2: #{tpu_custom_call.1} parent=1 // pred_check
      _
    $region3: #{tpu_custom_call.1} parent=1 // pred_check_branch
      %11 = sbr.rel (0) target = $region5
    $region4: #{tpu_custom_call.1} parent=1 // pred_region
      %s12 = sadd.s32 0, 0
      %s13 = smul.u32 2, %s12
      %s15 = ssub.s32 256, 256
      %16 = vsyncadd [#allocation3], %s15
      %s17 = smul.addr %s13, 128
      %s18 = scalar_lea.hbm %s0, %s17
      %s19 = sshll.u32 [#allocation2], 4
      %s20 = int_to_ptr.vmem [resolvable:$true] %s19
      %25 = dma.hbm_to_vmem [thread:$0]  %s18, 256, %s20, [#allocation3], 128, 128, 8
    $region5: #{tpu_custom_call.1} parent=1 // pred_fallthru
      _
    // Predicated region
    $region6: #{tpu_custom_call.1} parent=1 // pred_check
      _
    $region7: #{tpu_custom_call.1} parent=1 // pred_check_branch
      %27 = sbr.rel (0) target = $region9
    $region8: #{tpu_custom_call.1} parent=1 // pred_region
      %s28 = sadd.s32 0, 0
      %s29 = smul.u32 2, %s28
      %s31 = ssub.s32 256, 256
      %32 = vsyncadd [#allocation6], %s31
      %s33 = smul.addr %s29, 128
      %s34 = scalar_lea.hbm %s1, %s33
      %s35 = sshll.u32 [#allocation5], 4
      %s36 = int_to_ptr.vmem [resolvable:$true] %s35
      %41 = dma.hbm_to_vmem [thread:$0]  %s34, 256, %s36, [#allocation6], 128, 128, 8
    $region9: #{tpu_custom_call.1} parent=1 // pred_fallthru
      _
    // Predicated region
    $region10: #{tpu_custom_call.1} parent=1 // pred_check
      _
    $region11: #{tpu_custom_call.1} parent=1 // pred_check_branch
      %43 = sbr.rel (0) target = $region13
    $region12: #{tpu_custom_call.1} parent=1 // pred_region
      %44 = dma.done [#allocation3], 256
    $region13: #{tpu_custom_call.1} parent=1 // pred_fallthru
      _
    // Predicated region
    $region14: #{tpu_custom_call.1} parent=1 // pred_check
      _
    $region15: #{tpu_custom_call.1} parent=1 // pred_check_branch
      %46 = sbr.rel (0) target = $region17
    $region16: #{tpu_custom_call.1} parent=1 // pred_region
      %47 = dma.done [#allocation6], 256
    $region17: #{tpu_custom_call.1} parent=1 // pred_fallthru
      _
    %s48 = sadd.s32 0, 0
    %s49 = smul.u32 2, %s48
    %s50 = sadd.s32 0, 0
    %s51 = smul.u32 2, %s50
    %p52 = scmp.eq.s32.totalorder 0, 0
    // Predicated region
    $region18: #{tpu_custom_call.1} parent=1 // pred_check
      %p53 = pneg %p52
    $region19: #{tpu_custom_call.1} parent=1 // pred_check_branch
      %55 = sbr.rel (%p53) target = $region21
    $region20: #{tpu_custom_call.1} parent=1 // pred_region
      %56 = vst [vmem:[#allocation7] sm:$0xff] 0.0
      %57 = vst [vmem:[#allocation7 + $0x8] sm:$0xff] 0.0
      %58 = vst [vmem:[#allocation7 + $0x10] sm:$0xff] 0.0
      %59 = vst [vmem:[#allocation7 + $0x18] sm:$0xff] 0.0
      %60 = vst [vmem:[#allocation7 + $0x20] sm:$0xff] 0.0
      %61 = vst [vmem:[#allocation7 + $0x28] sm:$0xff] 0.0
      %62 = vst [vmem:[#allocation7 + $0x30] sm:$0xff] 0.0
      %63 = vst [vmem:[#allocation7 + $0x38] sm:$0xff] 0.0
    $region21: #{tpu_custom_call.1} parent=1 // pred_fallthru
      _
    %v64 = vld [vmem:[#allocation2] sm:$0xff]
    %v65 = vld [vmem:[#allocation2 + $0x8] sm:$0xff]
    %v66 = vld [vmem:[#allocation5] sm:$0xff]
    %v67 = vld [vmem:[#allocation5 + $0x8] sm:$0xff]
    %v68 = vsub.f32 %v64, %v66
    %v69 = vsub.f32 %v65, %v67
    %v70 = vmul.f32 %v68, %v68
    %v71 = vmul.f32 %v69, %v69
    %v72 = vld [vmem:[#allocation7] sm:$0xff]
    %v73 = vld [vmem:[#allocation7 + $0x8] sm:$0xff]
    %v74 = vadd.f32 %v72, %v70
    %v75 = vadd.f32 %v73, %v71
    %76 = vst [vmem:[#allocation7] sm:$0xff] %v74
    %77 = vst [vmem:[#allocation7 + $0x8] sm:$0xff] %v75
    // Predicated region
    $region22: #{tpu_custom_call.1} parent=1 // pred_check
      _
    $region23: #{tpu_custom_call.1} parent=1 // pred_check_branch
      %79 = sbr.rel (0) target = $region25
    $region24: #{tpu_custom_call.1} parent=1 // pred_region
      %s81 = ssub.s32 1024, 1024
      %82 = vsyncadd [#allocation4], %s81
      %s83 = sshll.u32 [#allocation7], 4
      %s84 = int_to_ptr.vmem [resolvable:$true] %s83
      %89 = dma.vmem_to_hbm [thread:$0]  %s84, 1024, %s2, [#allocation4], 128, 128, 8
    $region25: #{tpu_custom_call.1} parent=1 // pred_fallthru
      _
    // Predicated region
    $region26: #{tpu_custom_call.1} parent=1 // pred_check
      _
    $region27: #{tpu_custom_call.1} parent=1 // pred_check_branch
      %91 = sbr.rel (0) target = $region29
    $region28: #{tpu_custom_call.1} parent=1 // pred_region
      %92 = dma.done [#allocation4], 1024
    $region29: #{tpu_custom_call.1} parent=1 // pred_fallthru
      _
    %93 = vsyncpa [#allocation3], 1
    %94 = vsyncpa [#allocation6], 1
    %95 = vsyncpa [#allocation4], 1

</llo_original>
